<compile_context>
chip_gen: v7x
topology: tpu7x:2x2x1
jax: 0.10.0
libtpu: 0.0.40
codegen_flags: <defaults>
</compile_context>

<pallas_src>
import functools

import jax
import jax.numpy as jnp
from jax.experimental import pallas as pl
from jax.experimental.pallas import tpu as pltpu

# FakeQuantize parameters as initialized by the module's __init__ (int8 activation qconfig).
FQ_SCALE = 1.0
FQ_ZERO_POINT = 0
QMIN = -128
QMAX = 127

_LANES = 128
_SUBLANES = 8
# 2048 rows x 128 lanes x 4 B = 1 MiB per block buffer (safe for v5e/v6e/v7x
# with 2-3 operands x double buffering).
_TARGET_ROWS = 2048
_VMEM_LIMIT_BYTES = 32 * 1024 * 1024


def _fake_quant(r, *, scale, inv_scale, zero_point):
    q = jnp.clip(jnp.round(r * inv_scale) + zero_point, QMIN, QMAX)
    return (q - zero_point) * scale


def _div_tensor_kernel(x_ref, y_ref, o_ref, *, scale, inv_scale, zero_point):
    # tensor / tensor branch + fake quantize
    r = x_ref[...] / y_ref[...]
    o_ref[...] = _fake_quant(
        r, scale=scale, inv_scale=inv_scale, zero_point=zero_point
    ).astype(o_ref.dtype)


def _div_scalar_tensor_kernel(y_ref, x_ref, o_ref, *, scale, inv_scale, zero_point):
    # size-1 tensor divisor resident in SMEM: exact true-division semantics,
    # no HBM broadcast of y.
    r = x_ref[...] / y_ref[0]
    o_ref[...] = _fake_quant(
        r, scale=scale, inv_scale=inv_scale, zero_point=zero_point
    ).astype(o_ref.dtype)


def _mul_const_kernel(x_ref, o_ref, *, mul_const, scale, zero_point):
    # python-scalar branch: (1/y) and (1/scale) fused into one constant.
    q = jnp.clip(jnp.round(x_ref[...] * mul_const) + zero_point, QMIN, QMAX)
    o_ref[...] = ((q - zero_point) * scale).astype(o_ref.dtype)


def _to_slab(a, pad_value):
    """Flatten to a lane-dense (rows, 128) slab; pad only if n % (8*128) != 0."""
    flat = a.reshape(-1)
    n = flat.shape[0]
    tile = _SUBLANES * _LANES
    pad = (-n) % tile
    if pad:
        flat = jnp.pad(flat, (0, pad), constant_values=pad_value)
    return flat.reshape(-1, _LANES), n


def _block_params(rows):
    """~1 MiB blocks; small inputs use a single full-extent block."""
    tile_rows = min(_TARGET_ROWS, rows)  # rows is always a multiple of 8
    grid = (pl.cdiv(rows, tile_rows),)
    spec = pl.BlockSpec((tile_rows, _LANES), lambda i: (i, 0))
    return grid, spec


def _compiler_params():
    return pltpu.CompilerParams(
        dimension_semantics=("parallel",),
        vmem_limit_bytes=_VMEM_LIMIT_BYTES,
    )


def qat_div(x, y):
    """JAX wrapper reproducing Div.forward(x, y)."""
    orig_shape = x.shape
    out_dtype = jnp.float32
    x = x.astype(jnp.float32)

    scale = float(FQ_SCALE)
    inv_scale = float(1.0 / FQ_SCALE)
    zp = FQ_ZERO_POINT

    if isinstance(y, (float, int)):
        # r = x * (1/y); fold 1/y and 1/scale into one constant.
        x_slab, n = _to_slab(x, 0.0)
        rows = x_slab.shape[0]
        grid, spec = _block_params(rows)
        kernel = functools.partial(
            _mul_const_kernel,
            mul_const=float(1.0 / y) * inv_scale,
            scale=scale,
            zero_point=zp,
        )
        out_slab = pl.pallas_call(
            kernel,
            out_shape=jax.ShapeDtypeStruct(x_slab.shape, out_dtype),
            grid=grid,
            in_specs=[spec],
            out_specs=spec,
            compiler_params=_compiler_params(),
        )(x_slab)
    else:
        y = jnp.asarray(y).astype(jnp.float32)
        if y.size == 1:
            # Scalar-tensor divisor: pass through SMEM (no HBM-sized broadcast).
            x_slab, n = _to_slab(x, 0.0)
            rows = x_slab.shape[0]
            grid, spec = _block_params(rows)
            kernel = functools.partial(
                _div_scalar_tensor_kernel,
                scale=scale,
                inv_scale=inv_scale,
                zero_point=zp,
            )
            out_slab = pl.pallas_call(
                kernel,
                out_shape=jax.ShapeDtypeStruct(x_slab.shape, out_dtype),
                grid=grid,
                in_specs=[
                    pl.BlockSpec(memory_space=pltpu.MemorySpace.SMEM),
                    spec,
                ],
                out_specs=spec,
                compiler_params=_compiler_params(),
            )(y.reshape(1), x_slab)
        else:
            if y.shape != x.shape:
                # TODO(synk): per-axis broadcast divisors (e.g. per-channel NCHW)
                # could reuse a small y tile via its own BlockSpec/index_map
                # instead of materializing a full-size copy.
                y = jnp.broadcast_to(y, x.shape)
            x_slab, n = _to_slab(x, 0.0)
            y_slab, _ = _to_slab(y, 1.0)  # pad divisor with 1s (avoid 0/0 in pad region)
            rows = x_slab.shape[0]
            grid, spec = _block_params(rows)
            kernel = functools.partial(
                _div_tensor_kernel,
                scale=scale,
                inv_scale=inv_scale,
                zero_point=zp,
            )
            out_slab = pl.pallas_call(
                kernel,
                out_shape=jax.ShapeDtypeStruct(x_slab.shape, out_dtype),
                grid=grid,
                in_specs=[spec, spec],
                out_specs=spec,
                compiler_params=_compiler_params(),
            )(x_slab, y_slab)

    out_flat = out_slab.reshape(-1)
    if out_flat.shape[0] != n:
        out_flat = out_flat[:n]
    return out_flat.reshape(orig_shape)


# TODO(synk): activation_pre_process / pre_process (observer-driven scale
# unification) and observer updates of the FakeQuantize state are training-time
# statistics with no clean Pallas equivalent for a synthetic (non-checkpoint)
# module; the fake-quant here uses the __init__-time state (scale=1.0, zp=0).

if __name__ == "__main__":
    key = jax.random.PRNGKey(0)
    kx, ky, kx2, ky2 = jax.random.split(key, 4)

    def ref(x, y):
        r = x * (1.0 / y) if isinstance(y, (float, int)) else x / y
        q = jnp.clip(jnp.round(r / FQ_SCALE) + FQ_ZERO_POINT, QMIN, QMAX)
        return (q - FQ_ZERO_POINT) * FQ_SCALE

    # Small NCHW activations.
    x = jax.random.normal(kx, (2, 4, 16, 16), dtype=jnp.float32) * 10.0
    # Keep divisor away from zero (positive, in [0.5, 2.5)).
    y = jax.random.uniform(ky, (2, 4, 16, 16), dtype=jnp.float32) * 2.0 + 0.5

    # Tensor / tensor path.
    out_t = jax.block_until_ready(qat_div(x, y))
    assert jnp.allclose(out_t, ref(x, y), atol=1e-5)
    assert out_t.shape == x.shape

    # Tensor / python-scalar path.
    out_s = jax.block_until_ready(qat_div(x, 2.0))
    assert jnp.allclose(out_s, ref(x, 2.0), atol=1e-5)
    assert out_s.shape == x.shape

    # Tensor / 0-d tensor divisor path (SMEM scalar).
    y0 = jnp.asarray(1.7, dtype=jnp.float32)
    out_0 = jax.block_until_ready(qat_div(x, y0))
    assert jnp.allclose(out_0, ref(x, y0), atol=1e-5)
    assert out_0.shape == x.shape

    # Larger ragged case: exercises padding + multi-step grid + partial last block.
    x2 = jax.random.normal(kx2, (2, 3, 230, 190), dtype=jnp.float32) * 5.0
    y2 = jax.random.uniform(ky2, (2, 3, 230, 190), dtype=jnp.float32) * 2.0 + 0.5
    out_2 = jax.block_until_ready(qat_div(x2, y2))
    assert jnp.allclose(out_2, ref(x2, y2), atol=1e-5)
    assert out_2.shape == x2.shape

    print("KERNEL_OK")
</pallas_src>

<mosaic_0001>
module attributes {stable_mosaic.version = 11 : i64} {
  func.func @_div_tensor_kernel(%arg0: i32, %arg1: memref<16x128xf32, #tpu.memory_space<vmem>>, %arg2: memref<16x128xf32, #tpu.memory_space<vmem>>, %arg3: memref<16x128xf32, #tpu.memory_space<vmem>>) attributes {dimension_semantics = [#tpu.dimension_semantics<parallel>], iteration_bounds = array<i64: 1>, scalar_prefetch = 0 : i64, scratch_operands = 0 : i64, tpu.core_type = #tpu.core_type<tc>, window_params = [{transform_indices = @transform_0, window_bounds = array<i64: 16, 128>}, {transform_indices = @transform_1, window_bounds = array<i64: 16, 128>}, {transform_indices = @transform_2, window_bounds = array<i64: 16, 128>}]} {
    %c0 = arith.constant 0 : index
    %c0_0 = arith.constant 0 : index
    %0 = vector.load %arg1[%c0, %c0_0] : memref<16x128xf32, #tpu.memory_space<vmem>>, vector<16x128xf32>
    %c0_1 = arith.constant 0 : index
    %c0_2 = arith.constant 0 : index
    %1 = vector.load %arg2[%c0_1, %c0_2] : memref<16x128xf32, #tpu.memory_space<vmem>>, vector<16x128xf32>
    %2 = arith.divf %0, %1 : vector<16x128xf32>
    %cst = arith.constant 1.000000e+00 : f32
    %3 = vector.broadcast %cst : f32 to vector<16x128xf32>
    %4 = arith.mulf %2, %3 : vector<16x128xf32>
    %5 = math.roundeven %4 : vector<16x128xf32>
    %cst_3 = arith.constant 0.000000e+00 : f32
    %6 = vector.broadcast %cst_3 : f32 to vector<16x128xf32>
    %7 = arith.addf %5, %6 : vector<16x128xf32>
    %c-128_i32 = arith.constant -128 : i32
    %c127_i32 = arith.constant 127 : i32
    %8 = arith.sitofp %c-128_i32 : i32 to f32
    %9 = vector.broadcast %8 : f32 to vector<16x128xf32>
    %10 = arith.maximumf %9, %7 : vector<16x128xf32>
    %11 = arith.sitofp %c127_i32 : i32 to f32
    %12 = vector.broadcast %11 : f32 to vector<16x128xf32>
    %13 = arith.minimumf %12, %10 : vector<16x128xf32>
    %cst_4 = arith.constant 0.000000e+00 : f32
    %14 = vector.broadcast %cst_4 : f32 to vector<16x128xf32>
    %15 = arith.subf %13, %14 : vector<16x128xf32>
    %cst_5 = arith.constant 1.000000e+00 : f32
    %16 = vector.broadcast %cst_5 : f32 to vector<16x128xf32>
    %17 = arith.mulf %15, %16 : vector<16x128xf32>
    %c0_6 = arith.constant 0 : index
    %c0_7 = arith.constant 0 : index
    %18 = vector.load %arg3[%c0_6, %c0_7] : memref<16x128xf32, #tpu.memory_space<vmem>>, vector<16x128xf32>
    tpu.vector_store %arg3[%c0_6, %c0_7], %17 {strides = array<i32>} : memref<16x128xf32, #tpu.memory_space<vmem>>, vector<16x128xf32>,
    return
  }
  func.func @transform_0(%arg0: i32) -> (i32, i32) {
    %c0_i32 = arith.constant 0 : i32
    %c0_i32_0 = arith.constant 0 : i32
    return %arg0, %c0_i32 : i32, i32
  }
  func.func @transform_1(%arg0: i32) -> (i32, i32) {
    %c0_i32 = arith.constant 0 : i32
    %c0_i32_0 = arith.constant 0 : i32
    return %arg0, %c0_i32 : i32, i32
  }
  func.func @transform_2(%arg0: i32) -> (i32, i32) {
    %c0_i32 = arith.constant 0 : i32
    %c0_i32_0 = arith.constant 0 : i32
    return %arg0, %c0_i32 : i32, i32
  }
}

</mosaic_0001>

<llo_original>
// kernel: tpu_custom_call.1
$region0: #{tpu_custom_call.1}
  #allocation0 [shape = 'u32[]', space=smem, size = 0x4, offset = 0x4, fixed_abs, tag = 'smem constant byte address 0x4 - core index']
  #allocation1 [shape = 'u32[144,128]{1,0:T(1,128)}', space=vmem, size = 0x12000, scoped, tag = 'internal scratch']
  %s0 = inlined_call_operand.hbm [shape: f32[16,128], index: 0, kind: input, shape index: {}]
  %s1 = inlined_call_operand.hbm [shape: f32[16,128], index: 1, kind: input, shape index: {}]
  %s2 = inlined_call_operand.hbm [shape: f32[16,128], index: 2, kind: output, shape index: {}]
  %s3 = sld [smem:[#allocation0]]
  $region26: #{tpu_custom_call.1} parent=0
    _
  %s5 = ssub.s32 1, %s3
  %s6 = scalar_select 0, %s5, %s3
  $region1: #{tpu_custom_call.1} parent=0
    #allocation2 [shape = 'u8[8192]{0}', space=vmem, size = 0x2000, scoped, tag = 'input window, operand 0, single buffered']
    #allocation3 [shape = 's32[1]{0}', space=sflag, size = 0x4, scoped, tag = 'scoped memory for tpu_custom_call.1']
    #allocation4 [shape = 's32[1]{0}', space=sflag, size = 0x4, scoped, tag = 'scoped memory for tpu_custom_call.1']
    #allocation5 [shape = 'u8[8192]{0}', space=vmem, size = 0x2000, scoped, tag = 'input window, operand 1, single buffered']
    #allocation6 [shape = 's32[1]{0}', space=sflag, size = 0x4, scoped, tag = 'scoped memory for tpu_custom_call.1']
    #allocation7 [shape = 'u8[8192]{0}', space=vmem, size = 0x2000, scoped, tag = 'output window, operand 0, single buffered']
    %7 = vsyncpa [#allocation3], 0
    %8 = vsyncpa [#allocation6], 0
    %9 = vsyncpa [#allocation4], 0
    // Predicated region
    $region2: #{tpu_custom_call.1} parent=1 // pred_check
      _
    $region3: #{tpu_custom_call.1} parent=1 // pred_check_branch
      %11 = sbr.rel (0) target = $region5
    $region4: #{tpu_custom_call.1} parent=1 // pred_region
      %s13 = ssub.s32 256, 256
      %14 = vsyncadd [#allocation3], %s13
      %s15 = sshll.u32 [#allocation2], 4
      %s16 = int_to_ptr.vmem [resolvable:$true] %s15
      %21 = dma.hbm_to_vmem [thread:$0]  %s0, 256, %s16, [#allocation3], 128, 128, 8
    $region5: #{tpu_custom_call.1} parent=1 // pred_fallthru
      _
    // Predicated region
    $region6: #{tpu_custom_call.1} parent=1 // pred_check
      _
    $region7: #{tpu_custom_call.1} parent=1 // pred_check_branch
      %23 = sbr.rel (0) target = $region9
    $region8: #{tpu_custom_call.1} parent=1 // pred_region
      %s25 = ssub.s32 256, 256
      %26 = vsyncadd [#allocation6], %s25
      %s27 = sshll.u32 [#allocation5], 4
      %s28 = int_to_ptr.vmem [resolvable:$true] %s27
      %33 = dma.hbm_to_vmem [thread:$0]  %s1, 256, %s28, [#allocation6], 128, 128, 8
    $region9: #{tpu_custom_call.1} parent=1 // pred_fallthru
      _
    // Predicated region
    $region10: #{tpu_custom_call.1} parent=1 // pred_check
      _
    $region11: #{tpu_custom_call.1} parent=1 // pred_check_branch
      %35 = sbr.rel (0) target = $region13
    $region12: #{tpu_custom_call.1} parent=1 // pred_region
      %36 = dma.done [#allocation3], 256
    $region13: #{tpu_custom_call.1} parent=1 // pred_fallthru
      _
    // Predicated region
    $region14: #{tpu_custom_call.1} parent=1 // pred_check
      _
    $region15: #{tpu_custom_call.1} parent=1 // pred_check_branch
      %38 = sbr.rel (0) target = $region17
    $region16: #{tpu_custom_call.1} parent=1 // pred_region
      %39 = dma.done [#allocation6], 256
    $region17: #{tpu_custom_call.1} parent=1 // pred_fallthru
      _
    %v40 = vld [vmem:[#allocation2] sm:$0xff]
    %v41 = vld [vmem:[#allocation2 + $0x8] sm:$0xff]
    %v42 = vld [vmem:[#allocation5] sm:$0xff]
    %v43 = vld [vmem:[#allocation5 + $0x8] sm:$0xff]
    %v44 = vrcp.pop %v42
    %v45 = vmul.f32 %v40, %v44
    %v46 = vrcp.pop %v43
    %v47 = vmul.f32 %v41, %v46
    %v48 = vround.ne.pseudo %v45
    %v49 = vround.ne.pseudo %v47
    %v50 = vadd.f32 %v48, 0.0
    %v51 = vadd.f32 %v49, 0.0
    %v52 = vmax.f32 %v50, -128.0
    %v53 = vmax.f32 %v51, -128.0
    %v54 = vmin.f32 %v52, 127.0
    %v55 = vmin.f32 %v53, 127.0
    %56 = vst [vmem:[#allocation7] sm:$0xff] %v54
    %57 = vst [vmem:[#allocation7 + $0x8] sm:$0xff] %v55
    // Predicated region
    $region18: #{tpu_custom_call.1} parent=1 // pred_check
      _
    $region19: #{tpu_custom_call.1} parent=1 // pred_check_branch
      %59 = sbr.rel (0) target = $region21
    $region20: #{tpu_custom_call.1} parent=1 // pred_region
      %s61 = ssub.s32 256, 256
      %62 = vsyncadd [#allocation4], %s61
      %s63 = sshll.u32 [#allocation7], 4
      %s64 = int_to_ptr.vmem [resolvable:$true] %s63
      %69 = dma.vmem_to_hbm [thread:$0]  %s64, 256, %s2, [#allocation4], 128, 128, 8
    $region21: #{tpu_custom_call.1} parent=1 // pred_fallthru
      _
    // Predicated region
    $region22: #{tpu_custom_call.1} parent=1 // pred_check
      _
    $region23: #{tpu_custom_call.1} parent=1 // pred_check_branch
      %71 = sbr.rel (0) target = $region25
    $region24: #{tpu_custom_call.1} parent=1 // pred_region
      %72 = dma.done [#allocation4], 256
    $region25: #{tpu_custom_call.1} parent=1 // pred_fallthru
      _
    %73 = vsyncpa [#allocation3], 1
    %74 = vsyncpa [#allocation6], 1
    %75 = vsyncpa [#allocation4], 1

</llo_original>
